<compile_context>
chip_gen: v6e
topology: v6e:2x2x1
jax: 0.10.0
libtpu: 0.0.40
codegen_flags: <defaults>
</compile_context>

<pallas_src>
import jax
import jax.numpy as jnp
from jax import lax
from jax.experimental import pallas as pl
from jax.experimental.pallas import tpu as pltpu  # noqa: F401  (kept for future tuning knobs)

# ----------------------------- config (small) ---------------------------------
B, S = 2, 8          # batch, seq
W, L = 3, 5          # number of walks / walk length
WL = W * L
BS = B * S
BSWL = BS * WL
D = 32               # hidden_size
VOCAB = 21           # vocab_size (padding_idx = 0)


# ------------------------------ Pallas kernel ----------------------------------
def sge_embedding_bias_kernel(ids_ref, gmean_ref, table_ref, w_ref, out_ref):
    """ids_ref   : (B*S*W*L, 1)   int32  flattened walk node ids
       gmean_ref : (B*S, B*S*W*L) f32    group-mean matrix (1/(W*L) on blocks)
       table_ref : (VOCAB, D)     f32    embedding table (row 0 = padding = 0)
       w_ref     : (D, D)         f32    linear weight, pre-transposed (in, out)
       out_ref   : (B*S, D)       f32"""
    f32 = jnp.float32
    # Embedding gather expressed as a one-hot matrix (MXU-friendly, no dynamic gather).
    vocab_iota = lax.broadcasted_iota(jnp.int32, (BSWL, VOCAB), 1)
    onehot = (ids_ref[...] == vocab_iota).astype(f32)                       # (BSWL, VOCAB)
    # Mean over the (W, L) walk axes: constant group-mean matmul (1/WL folded in).
    counts = jnp.dot(gmean_ref[...], onehot, preferred_element_type=f32)    # (BS, VOCAB)
    # counts @ table == mean node embedding per (b, s) row.
    pe = jnp.dot(counts, table_ref[...], preferred_element_type=f32)        # (BS, D)
    # nn.Linear(D, D, bias=False)
    out_ref[...] = jnp.dot(pe, w_ref[...], preferred_element_type=f32)      # (BS, D)


# ------------------------------ pallas wrapper ----------------------------------
def sge_embedding_bias(walk_paths, node_table, w_t):
    """walk_paths (B,S,W,L) int; node_table (VOCAB, D); w_t (D, D) = linear W^T."""
    ids = walk_paths.reshape(BSWL, 1).astype(jnp.int32)
    # constant group-mean matrix: sums consecutive blocks of WL rows, scaled by 1/WL
    gmean = jnp.repeat(jnp.eye(BS, dtype=jnp.float32), WL, axis=1) * (1.0 / WL)  # (16, 240)

    out2d = pl.pallas_call(
        sge_embedding_bias_kernel,
        out_shape=jax.ShapeDtypeStruct((BS, D), jnp.float32),
    )(ids, gmean, node_table.astype(jnp.float32), w_t.astype(jnp.float32))

    return out2d.reshape(B, S, D)


# --------------------------- pure-JAX reference ---------------------------------
def reference_forward(walk_paths, node_table, w_t):
    emb = node_table[walk_paths]                    # (B, S, W, L, D)
    path_embedding = jnp.mean(emb, axis=(2, 3))     # (B, S, D)
    return path_embedding @ w_t                     # linear, no bias


# ------------------------------------ main --------------------------------------
if __name__ == "__main__":
    key = jax.random.PRNGKey(0)
    k_tab, k_w, k_ids = jax.random.split(key, 3)

    # parameters (deterministic, synthetic)
    node_table = jax.random.normal(k_tab, (VOCAB, D), dtype=jnp.float32)
    node_table = node_table.at[0].set(0.0)          # padding_idx = 0
    # nn.Linear(D, D, bias=False) weight stored pre-transposed as (in, out)
    w_t = 0.1 * jax.random.normal(k_w, (D, D), dtype=jnp.float32)

    # inputs
    walk_paths = jax.random.randint(k_ids, (B, S, W, L), 0, VOCAB)

    out = jax.block_until_ready(sge_embedding_bias(walk_paths, node_table, w_t))

    with jax.default_matmul_precision("highest"):
        ref = jax.block_until_ready(reference_forward(walk_paths, node_table, w_t))

    err = float(jnp.max(jnp.abs(out - ref)))
    assert out.shape == (B, S, D)
    assert err < 5e-2, f"kernel mismatch vs reference, max abs err = {err}"
    print("KERNEL_OK")
</pallas_src>

<mosaic_0001>
module attributes {stable_mosaic.version = 11 : i64} {
  func.func @sge_embedding_bias_kernel(%arg0: memref<240x1xi32, #tpu.memory_space<vmem>>, %arg1: memref<16x240xf32, #tpu.memory_space<vmem>>, %arg2: memref<21x32xf32, #tpu.memory_space<vmem>>, %arg3: memref<32x32xf32, #tpu.memory_space<vmem>>, %arg4: memref<16x32xf32, #tpu.memory_space<vmem>>) attributes {dimension_semantics = [], scalar_prefetch = 0 : i64, scratch_operands = 0 : i64, tpu.core_type = #tpu.core_type<tc>} {
    %0 = tpu.iota {dimensions = array<i32: 1>} : vector<240x21xi32>
    %c0 = arith.constant 0 : index
    %c0_0 = arith.constant 0 : index
    %1 = vector.load %arg0[%c0, %c0_0] : memref<240x1xi32, #tpu.memory_space<vmem>>, vector<240x1xi32>
    %2 = vector.broadcast %1 : vector<240x1xi32> to vector<240x21xi32>
    %3 = arith.cmpi eq, %2, %0 : vector<240x21xi32>
    %4 = arith.extui %3 : vector<240x21xi1> to vector<240x21xi32>
    %5 = arith.sitofp %4 : vector<240x21xi32> to vector<240x21xf32>
    %c0_1 = arith.constant 0 : index
    %c0_2 = arith.constant 0 : index
    %6 = vector.load %arg1[%c0_1, %c0_2] : memref<16x240xf32, #tpu.memory_space<vmem>>, vector<16x240xf32>
    %cst = arith.constant dense<0.000000e+00> : vector<16x21xf32>
    %7 = tpu.matmul %6, %5, %cst {dimension_numbers = #tpu.dot_dimension_numbers<[1], [0], [0], [1], [0, 0, 1, 1], [], []>} : vector<16x240xf32>, vector<240x21xf32>, vector<16x21xf32> -> vector<16x21xf32>
    %c0_3 = arith.constant 0 : index
    %c0_4 = arith.constant 0 : index
    %8 = vector.load %arg2[%c0_3, %c0_4] : memref<21x32xf32, #tpu.memory_space<vmem>>, vector<21x32xf32>
    %cst_5 = arith.constant dense<0.000000e+00> : vector<16x32xf32>
    %9 = tpu.matmul %7, %8, %cst_5 {dimension_numbers = #tpu.dot_dimension_numbers<[1], [0], [0], [1], [0, 0, 1, 1], [], []>} : vector<16x21xf32>, vector<21x32xf32>, vector<16x32xf32> -> vector<16x32xf32>
    %c0_6 = arith.constant 0 : index
    %c0_7 = arith.constant 0 : index
    %10 = vector.load %arg3[%c0_6, %c0_7] : memref<32x32xf32, #tpu.memory_space<vmem>>, vector<32x32xf32>
    %cst_8 = arith.constant dense<0.000000e+00> : vector<16x32xf32>
    %11 = tpu.matmul %9, %10, %cst_8 {dimension_numbers = #tpu.dot_dimension_numbers<[1], [0], [0], [1], [0, 0, 1, 1], [], []>} : vector<16x32xf32>, vector<32x32xf32>, vector<16x32xf32> -> vector<16x32xf32>
    %c0_9 = arith.constant 0 : index
    %c0_10 = arith.constant 0 : index
    %12 = vector.load %arg4[%c0_9, %c0_10] : memref<16x32xf32, #tpu.memory_space<vmem>>, vector<16x32xf32>
    tpu.vector_store %arg4[%c0_9, %c0_10], %11 {strides = array<i32>} : memref<16x32xf32, #tpu.memory_space<vmem>>, vector<16x32xf32>,
    return
  }
}

</mosaic_0001>

<llo_original>
// kernel: tpu_custom_call.1
$region0: #{tpu_custom_call.1}
  #allocation0 [shape = 'u32[]', space=smem, size = 0x4, offset = 0x4, fixed_abs, tag = 'smem constant byte address 0x4 - core index']
  #allocation1 [shape = 'u32[144,128]{1,0:T(1,128)}', space=vmem, size = 0x12000, scoped, tag = 'internal scratch']
  %s0 = inlined_call_operand.vmem [shape: s32[240,1], index: 0, kind: input, shape index: {}]
  %s1 = inlined_call_operand.vmem [shape: f32[16,240], index: 1, kind: input, shape index: {}]
  %s2 = inlined_call_operand.vmem [shape: f32[21,32], index: 2, kind: input, shape index: {}]
  %s3 = inlined_call_operand.vmem [shape: f32[32,32], index: 3, kind: input, shape index: {}]
  %s4 = inlined_call_operand.hbm [shape: f32[16,32], index: 4, kind: output, shape index: {}]
  %s5 = sld [smem:[#allocation0]]
  $region26: #{tpu_custom_call.1} parent=0
    _
  %s7 = ssub.s32 1, %s5
  %s8 = scalar_select 0, %s7, %s5
  $region1: #{tpu_custom_call.1} parent=0
    #allocation2 [shape = 'u8[8192]{0}', space=vmem, size = 0x2000, scoped, tag = 'output window, operand 0, single buffered']
    #allocation3 [shape = 's32[1]{0}', space=sflag, size = 0x4, scoped, tag = 'scoped memory for tpu_custom_call.1']
    %9 = vsyncpa [#allocation3], 0
    // Predicated region
    $region2: #{tpu_custom_call.1} parent=1 // pred_check
      _
    $region3: #{tpu_custom_call.1} parent=1 // pred_check_branch
      %11 = sbr.rel (0) target = $region5
    $region4: #{tpu_custom_call.1} parent=1 // pred_region
      _
    $region5: #{tpu_custom_call.1} parent=1 // pred_fallthru
      _
    // Predicated region
    $region6: #{tpu_custom_call.1} parent=1 // pred_check
      _
    $region7: #{tpu_custom_call.1} parent=1 // pred_check_branch
      %13 = sbr.rel (0) target = $region9
    $region8: #{tpu_custom_call.1} parent=1 // pred_region
      _
    $region9: #{tpu_custom_call.1} parent=1 // pred_fallthru
      _
    // Predicated region
    $region10: #{tpu_custom_call.1} parent=1 // pred_check
      _
    $region11: #{tpu_custom_call.1} parent=1 // pred_check_branch
      %15 = sbr.rel (0) target = $region13
    $region12: #{tpu_custom_call.1} parent=1 // pred_region
      _
    $region13: #{tpu_custom_call.1} parent=1 // pred_fallthru
      _
    // Predicated region
    $region14: #{tpu_custom_call.1} parent=1 // pred_check
      _
    $region15: #{tpu_custom_call.1} parent=1 // pred_check_branch
      %17 = sbr.rel (0) target = $region17
    $region16: #{tpu_custom_call.1} parent=1 // pred_region
      _
    $region17: #{tpu_custom_call.1} parent=1 // pred_fallthru
      _
    %v18 = vlaneseq
    %v19 = vand.u32 %v18, 127
    %v20 = vld [vmem:[%s0] sm:$0xff]
    %v21 = vld [vmem:[%s0 + $0x8] sm:$0xff]
    %v22 = vld [vmem:[%s0 + $0x10] sm:$0xff]
    %v23 = vld [vmem:[%s0 + $0x18] sm:$0xff]
    %v24 = vld [vmem:[%s0 + $0x20] sm:$0xff]
    %v25 = vld [vmem:[%s0 + $0x28] sm:$0xff]
    %v26 = vld [vmem:[%s0 + $0x30] sm:$0xff]
    %v27 = vld [vmem:[%s0 + $0x38] sm:$0xff]
    %v28 = vld [vmem:[%s0 + $0x40] sm:$0xff]
    %v29 = vld [vmem:[%s0 + $0x48] sm:$0xff]
    %v30 = vld [vmem:[%s0 + $0x50] sm:$0xff]
    %v31 = vld [vmem:[%s0 + $0x58] sm:$0xff]
    %v32 = vld [vmem:[%s0 + $0x60] sm:$0xff]
    %v33 = vld [vmem:[%s0 + $0x68] sm:$0xff]
    %v34 = vld [vmem:[%s0 + $0x70] sm:$0xff]
    %v35 = vld [vmem:[%s0 + $0x78] sm:$0xff]
    %v36 = vld [vmem:[%s0 + $0x80] sm:$0xff]
    %v37 = vld [vmem:[%s0 + $0x88] sm:$0xff]
    %v38 = vld [vmem:[%s0 + $0x90] sm:$0xff]
    %v39 = vld [vmem:[%s0 + $0x98] sm:$0xff]
    %v40 = vld [vmem:[%s0 + $0xa0] sm:$0xff]
    %v41 = vld [vmem:[%s0 + $0xa8] sm:$0xff]
    %v42 = vld [vmem:[%s0 + $0xb0] sm:$0xff]
    %v43 = vld [vmem:[%s0 + $0xb8] sm:$0xff]
    %v44 = vld [vmem:[%s0 + $0xc0] sm:$0xff]
    %v45 = vld [vmem:[%s0 + $0xc8] sm:$0xff]
    %v46 = vld [vmem:[%s0 + $0xd0] sm:$0xff]
    %v47 = vld [vmem:[%s0 + $0xd8] sm:$0xff]
    %v48 = vld [vmem:[%s0 + $0xe0] sm:$0xff]
    %v49 = vld [vmem:[%s0 + $0xe8] sm:$0xff]
    %50 = vset.pattern.permute.xlu0 0
    %51 = vperm.xlu0 %50, %v20
    %v52 = vpop.permute.xlu0 %51
    %53 = vset.pattern.permute.xlu0 0
    %54 = vperm.xlu0 %53, %v21
    %v55 = vpop.permute.xlu0 %54
    %56 = vset.pattern.permute.xlu0 0
    %57 = vperm.xlu0 %56, %v22
    %v58 = vpop.permute.xlu0 %57
    %59 = vset.pattern.permute.xlu0 0
    %60 = vperm.xlu0 %59, %v23
    %v61 = vpop.permute.xlu0 %60
    %62 = vset.pattern.permute.xlu0 0
    %63 = vperm.xlu0 %62, %v24
    %v64 = vpop.permute.xlu0 %63
    %65 = vset.pattern.permute.xlu0 0
    %66 = vperm.xlu0 %65, %v25
    %v67 = vpop.permute.xlu0 %66
    %68 = vset.pattern.permute.xlu0 0
    %69 = vperm.xlu0 %68, %v26
    %v70 = vpop.permute.xlu0 %69
    %71 = vset.pattern.permute.xlu0 0
    %72 = vperm.xlu0 %71, %v27
    %v73 = vpop.permute.xlu0 %72
    %74 = vset.pattern.permute.xlu0 0
    %75 = vperm.xlu0 %74, %v28
    %v76 = vpop.permute.xlu0 %75
    %77 = vset.pattern.permute.xlu0 0
    %78 = vperm.xlu0 %77, %v29
    %v79 = vpop.permute.xlu0 %78
    %80 = vset.pattern.permute.xlu0 0
    %81 = vperm.xlu0 %80, %v30
    %v82 = vpop.permute.xlu0 %81
    %83 = vset.pattern.permute.xlu0 0
    %84 = vperm.xlu0 %83, %v31
    %v85 = vpop.permute.xlu0 %84
    %86 = vset.pattern.permute.xlu0 0
    %87 = vperm.xlu0 %86, %v32
    %v88 = vpop.permute.xlu0 %87
    %89 = vset.pattern.permute.xlu0 0
    %90 = vperm.xlu0 %89, %v33
    %v91 = vpop.permute.xlu0 %90
    %92 = vset.pattern.permute.xlu0 0
    %93 = vperm.xlu0 %92, %v34
    %v94 = vpop.permute.xlu0 %93
    %95 = vset.pattern.permute.xlu0 0
    %96 = vperm.xlu0 %95, %v35
    %v97 = vpop.permute.xlu0 %96
    %98 = vset.pattern.permute.xlu0 0
    %99 = vperm.xlu0 %98, %v36
    %v100 = vpop.permute.xlu0 %99
    %101 = vset.pattern.permute.xlu0 0
    %102 = vperm.xlu0 %101, %v37
    %v103 = vpop.permute.xlu0 %102
    %104 = vset.pattern.permute.xlu0 0
    %105 = vperm.xlu0 %104, %v38
    %v106 = vpop.permute.xlu0 %105
    %107 = vset.pattern.permute.xlu0 0
    %108 = vperm.xlu0 %107, %v39
    %v109 = vpop.permute.xlu0 %108
    %110 = vset.pattern.permute.xlu0 0
    %111 = vperm.xlu0 %110, %v40
    %v112 = vpop.permute.xlu0 %111
    %113 = vset.pattern.permute.xlu0 0
    %114 = vperm.xlu0 %113, %v41
    %v115 = vpop.permute.xlu0 %114
    %116 = vset.pattern.permute.xlu0 0
    %117 = vperm.xlu0 %116, %v42
    %v118 = vpop.permute.xlu0 %117
    %119 = vset.pattern.permute.xlu0 0
    %120 = vperm.xlu0 %119, %v43
    %v121 = vpop.permute.xlu0 %120
    %122 = vset.pattern.permute.xlu0 0
    %123 = vperm.xlu0 %122, %v44
    %v124 = vpop.permute.xlu0 %123
    %125 = vset.pattern.permute.xlu0 0
    %126 = vperm.xlu0 %125, %v45
    %v127 = vpop.permute.xlu0 %126
    %128 = vset.pattern.permute.xlu0 0
    %129 = vperm.xlu0 %128, %v46
    %v130 = vpop.permute.xlu0 %129
    %131 = vset.pattern.permute.xlu0 0
    %132 = vperm.xlu0 %131, %v47
    %v133 = vpop.permute.xlu0 %132
    %134 = vset.pattern.permute.xlu0 0
    %135 = vperm.xlu0 %134, %v48
    %v136 = vpop.permute.xlu0 %135
    %137 = vset.pattern.permute.xlu0 0
    %138 = vperm.xlu0 %137, %v49
    %v139 = vpop.permute.xlu0 %138
    %vm140 = vcmp.eq.s32.totalorder %v52, %v19
    %vm141 = vcmp.eq.s32.totalorder %v55, %v19
    %vm142 = vcmp.eq.s32.totalorder %v58, %v19
    %vm143 = vcmp.eq.s32.totalorder %v61, %v19
    %vm144 = vcmp.eq.s32.totalorder %v64, %v19
    %vm145 = vcmp.eq.s32.totalorder %v67, %v19
    %vm146 = vcmp.eq.s32.totalorder %v70, %v19
    %vm147 = vcmp.eq.s32.totalorder %v73, %v19
    %vm148 = vcmp.eq.s32.totalorder %v76, %v19
    %vm149 = vcmp.eq.s32.totalorder %v79, %v19
    %vm150 = vcmp.eq.s32.totalorder %v82, %v19
    %vm151 = vcmp.eq.s32.totalorder %v85, %v19
    %vm152 = vcmp.eq.s32.totalorder %v88, %v19
    %vm153 = vcmp.eq.s32.totalorder %v91, %v19
    %vm154 = vcmp.eq.s32.totalorder %v94, %v19
    %vm155 = vcmp.eq.s32.totalorder %v97, %v19
    %vm156 = vcmp.eq.s32.totalorder %v100, %v19
    %vm157 = vcmp.eq.s32.totalorder %v103, %v19
    %vm158 = vcmp.eq.s32.totalorder %v106, %v19
    %vm159 = vcmp.eq.s32.totalorder %v109, %v19
    %vm160 = vcmp.eq.s32.totalorder %v112, %v19
    %vm161 = vcmp.eq.s32.totalorder %v115, %v19
    %vm162 = vcmp.eq.s32.totalorder %v118, %v19
    %vm163 = vcmp.eq.s32.totalorder %v121, %v19
    %vm164 = vcmp.eq.s32.totalorder %v124, %v19
    %vm165 = vcmp.eq.s32.totalorder %v127, %v19
    %vm166 = vcmp.eq.s32.totalorder %v130, %v19
    %vm167 = vcmp.eq.s32.totalorder %v133, %v19
    %vm168 = vcmp.eq.s32.totalorder %v136, %v19
    %vm169 = vcmp.eq.s32.totalorder %v139, %v19
    %v170 = vsel %vm140, 1, 0
    %v171 = vsel %vm141, 1, 0
    %v172 = vsel %vm142, 1, 0
    %v173 = vsel %vm143, 1, 0
    %v174 = vsel %vm144, 1, 0
    %v175 = vsel %vm145, 1, 0
    %v176 = vsel %vm146, 1, 0
    %v177 = vsel %vm147, 1, 0
    %v178 = vsel %vm148, 1, 0
    %v179 = vsel %vm149, 1, 0
    %v180 = vsel %vm150, 1, 0
    %v181 = vsel %vm151, 1, 0
    %v182 = vsel %vm152, 1, 0
    %v183 = vsel %vm153, 1, 0
    %v184 = vsel %vm154, 1, 0
    %v185 = vsel %vm155, 1, 0
    %v186 = vsel %vm156, 1, 0
    %v187 = vsel %vm157, 1, 0
    %v188 = vsel %vm158, 1, 0
    %v189 = vsel %vm159, 1, 0
    %v190 = vsel %vm160, 1, 0
    %v191 = vsel %vm161, 1, 0
    %v192 = vsel %vm162, 1, 0
    %v193 = vsel %vm163, 1, 0
    %v194 = vsel %vm164, 1, 0
    %v195 = vsel %vm165, 1, 0
    %v196 = vsel %vm166, 1, 0
    %v197 = vsel %vm167, 1, 0
    %v198 = vsel %vm168, 1, 0
    %v199 = vsel %vm169, 1, 0
    %v200 = vcvt.s32.f32 %v170
    %v201 = vcvt.s32.f32 %v171
    %v202 = vcvt.s32.f32 %v172
    %v203 = vcvt.s32.f32 %v173
    %v204 = vcvt.s32.f32 %v174
    %v205 = vcvt.s32.f32 %v175
    %v206 = vcvt.s32.f32 %v176
    %v207 = vcvt.s32.f32 %v177
    %v208 = vcvt.s32.f32 %v178
    %v209 = vcvt.s32.f32 %v179
    %v210 = vcvt.s32.f32 %v180
    %v211 = vcvt.s32.f32 %v181
    %v212 = vcvt.s32.f32 %v182
    %v213 = vcvt.s32.f32 %v183
    %v214 = vcvt.s32.f32 %v184
    %v215 = vcvt.s32.f32 %v185
    %v216 = vcvt.s32.f32 %v186
    %v217 = vcvt.s32.f32 %v187
    %v218 = vcvt.s32.f32 %v188
    %v219 = vcvt.s32.f32 %v189
    %v220 = vcvt.s32.f32 %v190
    %v221 = vcvt.s32.f32 %v191
    %v222 = vcvt.s32.f32 %v192
    %v223 = vcvt.s32.f32 %v193
    %v224 = vcvt.s32.f32 %v194
    %v225 = vcvt.s32.f32 %v195
    %v226 = vcvt.s32.f32 %v196
    %v227 = vcvt.s32.f32 %v197
    %v228 = vcvt.s32.f32 %v198
    %v229 = vcvt.s32.f32 %v199
    %v230 = vld [vmem:[%s1] sm:$0xff]
    %v231 = vld [vmem:[%s1 + $0x8] sm:$0xff]
    %v232 = vld [vmem:[%s1 + $0x10] sm:$0xff]
    %v233 = vld [vmem:[%s1 + $0x18] sm:$0xff]
    %vm234 = vcmask 916480
    %v236 = vsel %vm234, %v231, 0
    %v239 = vsel %vm234, %v233, 0
    %241 = vmatprep.subr.mxu0 0.0
    %242 = vmatpush1.msra.mxu0 %v215
    %243 = vmatprep.subr.mxu0 0.0
    %244 = vmatpush1.msra.mxu0 %v214
    %245 = vmatprep.subr.mxu0 0.0
    %246 = vmatpush1.msra.mxu0 %v213
    %247 = vmatprep.subr.mxu0 0.0
    %248 = vmatpush1.msra.mxu0 %v212
    %249 = vmatprep.subr.mxu0 0.0
    %250 = vmatpush1.msra.mxu0 %v211
    %251 = vmatprep.subr.mxu0 0.0
    %252 = vmatpush1.msra.mxu0 %v210
    %253 = vmatprep.subr.mxu0 0.0
    %254 = vmatpush1.msra.mxu0 %v209
    %255 = vmatprep.subr.mxu0 0.0
    %256 = vmatpush1.msra.mxu0 %v208
    %257 = vmatprep.subr.mxu0 0.0
    %258 = vmatpush1.msra.mxu0 %v207
    %259 = vmatprep.subr.mxu0 0.0
    %260 = vmatpush1.msra.mxu0 %v206
    %261 = vmatprep.subr.mxu0 0.0
    %262 = vmatpush1.msra.mxu0 %v205
    %263 = vmatprep.subr.mxu0 0.0
    %264 = vmatpush1.msra.mxu0 %v204
    %265 = vmatprep.subr.mxu0 0.0
    %266 = vmatpush1.msra.mxu0 %v203
    %267 = vmatprep.subr.mxu0 0.0
    %268 = vmatpush1.msra.mxu0 %v202
    %269 = vmatprep.subr.mxu0 0.0
    %270 = vmatpush1.msra.mxu0 %v201
    %271 = vmatprep.subr.mxu0 0.0
    %272 = vmatpush1.msra.mxu0 %v200
    %273 = vmatprep.subr.mxu0 0.0
    %274 = vmatpush2.msra.mxu0 0.0
    %275 = vmatprep.subr.mxu0 0.0
    %276 = vmatpush2.msra.mxu0 0.0
    %277 = vmatprep.subr.mxu0 0.0
    %278 = vmatpush2.msra.mxu0 %v229
    %279 = vmatprep.subr.mxu0 0.0
    %280 = vmatpush2.msra.mxu0 %v228
    %281 = vmatprep.subr.mxu0 0.0
    %282 = vmatpush2.msra.mxu0 %v227
    %283 = vmatprep.subr.mxu0 0.0
    %284 = vmatpush2.msra.mxu0 %v226
    %285 = vmatprep.subr.mxu0 0.0
    %286 = vmatpush2.msra.mxu0 %v225
    %287 = vmatprep.subr.mxu0 0.0
    %288 = vmatpush2.msra.mxu0 %v224
    %289 = vmatprep.subr.mxu0 0.0
    %290 = vmatpush2.msra.mxu0 %v223
    %291 = vmatprep.subr.mxu0 0.0
    %292 = vmatpush2.msra.mxu0 %v222
    %293 = vmatprep.subr.mxu0 0.0
    %294 = vmatpush2.msra.mxu0 %v221
    %295 = vmatprep.subr.mxu0 0.0
    %296 = vmatpush2.msra.mxu0 %v220
    %297 = vmatprep.subr.mxu0 0.0
    %298 = vmatpush2.msra.mxu0 %v219
    %299 = vmatprep.subr.mxu0 0.0
    %300 = vmatpush2.msra.mxu0 %v218
    %301 = vmatprep.subr.mxu0 0.0
    %302 = vmatpush2.msra.mxu0 %v217
    %303 = vmatprep.subr.mxu0 0.0
    %304 = vmatpush2.msra.mxu0 %v216
    %305 = vmatprep.mubr.f32.mxu0 %v236
    %306 = vmatmul.mubr.f32.gmra.mxu0 %v230
    %v307 = vpop.f32.mrf.mxu0
    %v308 = vadd.f32 0.0, %v307
    %v309 = vpop.f32.mrf.mxu0
    %310 = vmatprep.mubr.f32.mxu0 %v239
    %311 = vmatmul.mubr.f32.gmra.mxu0 %v232
    %v312 = vpop.f32.mrf.mxu0
    %v313 = vadd.f32 0.0, %v312
    %v314 = vpop.f32.mrf.mxu0
    %315 = vdwg.mxu0
    %v316 = vld [vmem:[%s2] sm:$0xff]
    %v317 = vld [vmem:[%s2 + $0x8] sm:$0xff]
    %v318 = vld [vmem:[%s2 + $0x10] sm:$0x1f]
    %vm319 = vcmask 171008
    %v321 = vsel %vm319, %v308, 0
    %v324 = vsel %vm319, %v313, 0
    %vm326 = vcmask 1044480
    %v328 = vsel %vm326, %v318, 0
    %330 = vmatprep.subr.mxu0 0.0
    %331 = vmatpush1.msra.mxu0 0.0
    %332 = vmatprep.subr.mxu0 0.0
    %333 = vmatpush1.msra.mxu0 0.0
    %334 = vmatprep.subr.mxu0 0.0
    %335 = vmatpush1.msra.mxu0 0.0
    %336 = vmatprep.subr.mxu0 0.0
    %337 = vmatpush1.msra.mxu0 0.0
    %338 = vmatprep.subr.mxu0 0.0
    %339 = vmatpush1.msra.mxu0 0.0
    %340 = vmatprep.subr.mxu0 0.0
    %341 = vmatpush1.msra.mxu0 0.0
    %342 = vmatprep.subr.mxu0 0.0
    %343 = vmatpush1.msra.mxu0 0.0
    %344 = vmatprep.subr.mxu0 0.0
    %345 = vmatpush1.msra.mxu0 0.0
    %346 = vmatprep.subr.mxu0 0.0
    %347 = vmatpush1.msra.mxu0 0.0
    %348 = vmatprep.subr.mxu0 0.0
    %349 = vmatpush1.msra.mxu0 0.0
    %350 = vmatprep.subr.mxu0 0.0
    %351 = vmatpush1.msra.mxu0 0.0
    %352 = vmatprep.subr.mxu0 0.0
    %353 = vmatpush1.msra.mxu0 0.0
    %354 = vmatprep.subr.mxu0 0.0
    %355 = vmatpush1.msra.mxu0 0.0
    %356 = vmatprep.subr.mxu0 0.0
    %357 = vmatpush1.msra.mxu0 %v328
    %358 = vmatprep.subr.mxu0 0.0
    %359 = vmatpush1.msra.mxu0 %v317
    %360 = vmatprep.subr.mxu0 0.0
    %361 = vmatpush1.msra.mxu0 %v316
    %362 = vmatprep.subr.mxu0 0.0
    %363 = vmatpush2.msra.mxu0 0.0
    %364 = vmatprep.subr.mxu0 0.0
    %365 = vmatpush2.msra.mxu0 0.0
    %366 = vmatprep.subr.mxu0 0.0
    %367 = vmatpush2.msra.mxu0 0.0
    %368 = vmatprep.subr.mxu0 0.0
    %369 = vmatpush2.msra.mxu0 0.0
    %370 = vmatprep.subr.mxu0 0.0
    %371 = vmatpush2.msra.mxu0 0.0
    %372 = vmatprep.subr.mxu0 0.0
    %373 = vmatpush2.msra.mxu0 0.0
    %374 = vmatprep.subr.mxu0 0.0
    %375 = vmatpush2.msra.mxu0 0.0
    %376 = vmatprep.subr.mxu0 0.0
    %377 = vmatpush2.msra.mxu0 0.0
    %378 = vmatprep.subr.mxu0 0.0
    %379 = vmatpush2.msra.mxu0 0.0
    %380 = vmatprep.subr.mxu0 0.0
    %381 = vmatpush2.msra.mxu0 0.0
    %382 = vmatprep.subr.mxu0 0.0
    %383 = vmatpush2.msra.mxu0 0.0
    %384 = vmatprep.subr.mxu0 0.0
    %385 = vmatpush2.msra.mxu0 0.0
    %386 = vmatprep.subr.mxu0 0.0
    %387 = vmatpush2.msra.mxu0 0.0
    %388 = vmatprep.subr.mxu0 0.0
    %389 = vmatpush2.msra.mxu0 0.0
    %390 = vmatprep.subr.mxu0 0.0
    %391 = vmatpush2.msra.mxu0 0.0
    %392 = vmatprep.subr.mxu0 0.0
    %393 = vmatpush2.msra.mxu0 0.0
    %394 = vmatprep.mubr.f32.mxu0 0.0
    %395 = vmatmul.mubr.f32.gmra.mxu0 %v321
    %v396 = vpop.f32.mrf.mxu0
    %v397 = vadd.f32 0.0, %v396
    %v398 = vpop.f32.mrf.mxu0
    %399 = vmatprep.mubr.f32.mxu0 0.0
    %400 = vmatmul.mubr.f32.gmra.mxu0 %v324
    %v401 = vpop.f32.mrf.mxu0
    %v402 = vadd.f32 0.0, %v401
    %v403 = vpop.f32.mrf.mxu0
    %404 = vdwg.mxu0
    %v405 = vld [vmem:[%s3] sm:$0xff]
    %v406 = vld [vmem:[%s3 + $0x8] sm:$0xff]
    %v407 = vld [vmem:[%s3 + $0x10] sm:$0xff]
    %v408 = vld [vmem:[%s3 + $0x18] sm:$0xff]
    %vm409 = vcmask 261120
    %v411 = vsel %vm409, %v397, 0
    %v414 = vsel %vm409, %v402, 0
    %416 = vmatprep.subr.mxu0 0.0
    %417 = vmatpush1.msra.mxu0 0.0
    %418 = vmatprep.subr.mxu0 0.0
    %419 = vmatpush1.msra.mxu0 0.0
    %420 = vmatprep.subr.mxu0 0.0
    %421 = vmatpush1.msra.mxu0 0.0
    %422 = vmatprep.subr.mxu0 0.0
    %423 = vmatpush1.msra.mxu0 0.0
    %424 = vmatprep.subr.mxu0 0.0
    %425 = vmatpush1.msra.mxu0 0.0
    %426 = vmatprep.subr.mxu0 0.0
    %427 = vmatpush1.msra.mxu0 0.0
    %428 = vmatprep.subr.mxu0 0.0
    %429 = vmatpush1.msra.mxu0 0.0
    %430 = vmatprep.subr.mxu0 0.0
    %431 = vmatpush1.msra.mxu0 0.0
    %432 = vmatprep.subr.mxu0 0.0
    %433 = vmatpush1.msra.mxu0 0.0
    %434 = vmatprep.subr.mxu0 0.0
    %435 = vmatpush1.msra.mxu0 0.0
    %436 = vmatprep.subr.mxu0 0.0
    %437 = vmatpush1.msra.mxu0 0.0
    %438 = vmatprep.subr.mxu0 0.0
    %439 = vmatpush1.msra.mxu0 0.0
    %440 = vmatprep.subr.mxu0 0.0
    %441 = vmatpush1.msra.mxu0 %v408
    %442 = vmatprep.subr.mxu0 0.0
    %443 = vmatpush1.msra.mxu0 %v407
    %444 = vmatprep.subr.mxu0 0.0
    %445 = vmatpush1.msra.mxu0 %v406
    %446 = vmatprep.subr.mxu0 0.0
    %447 = vmatpush1.msra.mxu0 %v405
    %448 = vmatprep.subr.mxu0 0.0
    %449 = vmatpush2.msra.mxu0 0.0
    %450 = vmatprep.subr.mxu0 0.0
    %451 = vmatpush2.msra.mxu0 0.0
    %452 = vmatprep.subr.mxu0 0.0
    %453 = vmatpush2.msra.mxu0 0.0
    %454 = vmatprep.subr.mxu0 0.0
    %455 = vmatpush2.msra.mxu0 0.0
    %456 = vmatprep.subr.mxu0 0.0
    %457 = vmatpush2.msra.mxu0 0.0
    %458 = vmatprep.subr.mxu0 0.0
    %459 = vmatpush2.msra.mxu0 0.0
    %460 = vmatprep.subr.mxu0 0.0
    %461 = vmatpush2.msra.mxu0 0.0
    %462 = vmatprep.subr.mxu0 0.0
    %463 = vmatpush2.msra.mxu0 0.0
    %464 = vmatprep.subr.mxu0 0.0
    %465 = vmatpush2.msra.mxu0 0.0
    %466 = vmatprep.subr.mxu0 0.0
    %467 = vmatpush2.msra.mxu0 0.0
    %468 = vmatprep.subr.mxu0 0.0
    %469 = vmatpush2.msra.mxu0 0.0
    %470 = vmatprep.subr.mxu0 0.0
    %471 = vmatpush2.msra.mxu0 0.0
    %472 = vmatprep.subr.mxu0 0.0
    %473 = vmatpush2.msra.mxu0 0.0
    %474 = vmatprep.subr.mxu0 0.0
    %475 = vmatpush2.msra.mxu0 0.0
    %476 = vmatprep.subr.mxu0 0.0
    %477 = vmatpush2.msra.mxu0 0.0
    %478 = vmatprep.subr.mxu0 0.0
    %479 = vmatpush2.msra.mxu0 0.0
    %480 = vmatprep.mubr.f32.mxu0 0.0
    %481 = vmatmul.mubr.f32.gmra.mxu0 %v411
    %v482 = vpop.f32.mrf.mxu0
    %v483 = vadd.f32 0.0, %v482
    %v484 = vpop.f32.mrf.mxu0
    %485 = vmatprep.mubr.f32.mxu0 0.0
    %486 = vmatmul.mubr.f32.gmra.mxu0 %v414
    %v487 = vpop.f32.mrf.mxu0
    %v488 = vadd.f32 0.0, %v487
    %v489 = vpop.f32.mrf.mxu0
    %490 = vdwg.mxu0
    %491 = vst.msk [vmem:[#allocation2] sm:$0xff] %vm409, %v483
    %492 = vst.msk [vmem:[#allocation2 + $0x8] sm:$0xff] %vm409, %v488
    // Predicated region
    $region18: #{tpu_custom_call.1} parent=1 // pred_check
      _
    $region19: #{tpu_custom_call.1} parent=1 // pred_check_branch
      %494 = sbr.rel (0) target = $region21
    $region20: #{tpu_custom_call.1} parent=1 // pred_region
      %s496 = ssub.s32 256, 256
      %497 = vsyncadd [#allocation3], %s496
      %s498 = sshll.u32 [#allocation2], 4
      %s499 = int_to_ptr.vmem [resolvable:$true] %s498
      %504 = dma.vmem_to_hbm [thread:$0]  %s499, 256, %s4, [#allocation3], 128, 128, 8
    $region21: #{tpu_custom_call.1} parent=1 // pred_fallthru
      _
    // Predicated region
    $region22: #{tpu_custom_call.1} parent=1 // pred_check
      _
    $region23: #{tpu_custom_call.1} parent=1 // pred_check_branch
      %506 = sbr.rel (0) target = $region25
    $region24: #{tpu_custom_call.1} parent=1 // pred_region
      %507 = dma.done [#allocation3], 256
    $region25: #{tpu_custom_call.1} parent=1 // pred_fallthru
      _
    %508 = vsyncpa [#allocation3], 1

</llo_original>
